<compile_context>
chip_gen: v7x
topology: tpu7x:2x2x1
jax: 0.10.0
libtpu: 0.0.40
codegen_flags: <defaults>
</compile_context>

<pallas_src>
import jax
import jax.numpy as jnp
from jax.experimental import pallas as pl
from jax.experimental.pallas import tpu as pltpu


_TB = 128     # fixed batch tile: single source of truth for wrapper + jit fn
_LANE = 128   # fc4 output columns padded to this so the final store is lane-dense

_PARAM_ORDER = ("w1s", "w1a", "b1", "w2", "b2", "w3", "b3", "w4", "b4")


# ---------------------------------------------------------------------------
# Kernel
# ---------------------------------------------------------------------------
def critic_kernel(state_ref, action_ref,
                  w1s_ref, w1a_ref, b1_ref,
                  w2_ref, b2_ref,
                  w3_ref, b3_ref,
                  w4_ref, b4_ref,
                  out_ref):
    # Layer 1: fc1(concat(state, action)) as a split matmul -- no concat, no
    # lane padding of x, f32 operands (tiny K), f32 accumulation.
    h = jnp.dot(state_ref[...], w1s_ref[...], preferred_element_type=jnp.float32)
    h = h + jnp.dot(action_ref[...], w1a_ref[...],
                    preferred_element_type=jnp.float32)
    h = jnp.maximum(h + b1_ref[...], 0.0)

    # Layers 2-4: bf16 operands on the MXU, f32 accumulation, f32 bias/ReLU.
    h = jnp.dot(h.astype(jnp.bfloat16), w2_ref[...],
                preferred_element_type=jnp.float32)
    h = jnp.maximum(h + b2_ref[...], 0.0)

    h = jnp.dot(h.astype(jnp.bfloat16), w3_ref[...],
                preferred_element_type=jnp.float32)
    h = jnp.maximum(h + b3_ref[...], 0.0)

    h = jnp.dot(h.astype(jnp.bfloat16), w4_ref[...],
                preferred_element_type=jnp.float32)
    out_ref[...] = (h + b4_ref[...]).astype(out_ref.dtype)


# ---------------------------------------------------------------------------
# Helpers
# ---------------------------------------------------------------------------
def _round_up(x, m):
    return (x + m - 1) // m * m


def init_critic_params(key, state_dim, action_dim):
    """f32 master params matching nn.Linear default init U(-1/sqrt(in), 1/sqrt(in)).

    Weights are stored [in_features, out_features] (transpose of PyTorch)."""
    dims = [(state_dim + action_dim, 256), (256, 128), (128, 64),
            (64, action_dim)]
    params = {}
    keys = jax.random.split(key, 2 * len(dims))
    for i, (fan_in, fan_out) in enumerate(dims):
        bound = 1.0 / jnp.sqrt(jnp.float32(fan_in))
        params[f"w{i+1}"] = jax.random.uniform(
            keys[2 * i], (fan_in, fan_out), jnp.float32, -bound, bound)
        params[f"b{i+1}"] = jax.random.uniform(
            keys[2 * i + 1], (1, fan_out), jnp.float32, -bound, bound)
    return params


def prepare_params(master, state_dim):
    """Kernel-ready params.

    * w1 is split into its state / action row blocks (kept f32, no padding).
    * w2 / w3 / w4 cast to bf16; biases stay f32.
    * Only fc4's output columns (and b4) are zero-padded to _LANE so the final
      store is lane-dense; zero-padded columns are sliced off by the wrapper.
    """
    action_dim = master["w4"].shape[1]
    assert action_dim <= _LANE, action_dim
    pad_out = _LANE - action_dim
    w1 = master["w1"]
    return {
        "w1s": w1[:state_dim, :].astype(jnp.float32),
        "w1a": w1[state_dim:, :].astype(jnp.float32),
        "b1": master["b1"].astype(jnp.float32),
        "w2": master["w2"].astype(jnp.bfloat16),
        "b2": master["b2"].astype(jnp.float32),
        "w3": master["w3"].astype(jnp.bfloat16),
        "b3": master["b3"].astype(jnp.float32),
        "w4": jnp.pad(master["w4"], ((0, 0), (0, pad_out))).astype(jnp.bfloat16),
        "b4": jnp.pad(master["b4"], ((0, 0), (0, pad_out))).astype(jnp.float32),
    }


# ---------------------------------------------------------------------------
# Forward wrapper
# ---------------------------------------------------------------------------
@jax.jit
def _critic_forward_padded(state_p, action_p, prepared):
    Bp, state_dim = state_p.shape
    _, action_dim = action_p.shape
    # Single source of truth for the batch tile; trace-time check so tail rows
    # can never be silently dropped.
    assert Bp % _TB == 0, (Bp, _TB)
    grid = (Bp // _TB,)

    def batch_map(i):
        return (i, 0)

    # Weights / biases: whole-array VMEM residents (constant across the grid,
    # no pipelining / double-buffering needed).
    resident = pl.BlockSpec(memory_space=pltpu.MemorySpace.VMEM)

    in_specs = [pl.BlockSpec((_TB, state_dim), batch_map),
                pl.BlockSpec((_TB, action_dim), batch_map)]
    in_specs += [resident] * len(_PARAM_ORDER)

    return pl.pallas_call(
        critic_kernel,
        out_shape=jax.ShapeDtypeStruct((Bp, _LANE), jnp.float32),
        grid=grid,
        in_specs=in_specs,
        out_specs=pl.BlockSpec((_TB, _LANE), batch_map),
        compiler_params=pltpu.CompilerParams(
            dimension_semantics=("parallel",)),
    )(state_p, action_p, *(prepared[name] for name in _PARAM_ORDER))


def critic_forward(state, action, prepared):
    """state: [B, state_dim] f32, action: [B, action_dim] f32 -> [B, action_dim] f32."""
    B = state.shape[0]
    action_dim = action.shape[1]
    Bp = _round_up(B, _TB)
    if Bp != B:
        # Zero rows are exact (computed then sliced off); only triggers for
        # ragged batches, and padding is bounded to < _TB rows.
        state = jnp.pad(state, ((0, Bp - B), (0, 0)))
        action = jnp.pad(action, ((0, Bp - B), (0, 0)))
    out = _critic_forward_padded(state, action, prepared)
    return out[:B, :action_dim]


# ---------------------------------------------------------------------------
# Pure-JAX reference (f32) for correctness check
# ---------------------------------------------------------------------------
def critic_ref(state, action, prepared, action_dim):
    f32 = lambda a: a.astype(jnp.float32)
    h = state @ f32(prepared["w1s"]) + action @ f32(prepared["w1a"]) + prepared["b1"]
    h = jax.nn.relu(h)
    h = jax.nn.relu(h @ f32(prepared["w2"]) + prepared["b2"])
    h = jax.nn.relu(h @ f32(prepared["w3"]) + prepared["b3"])
    out = h @ f32(prepared["w4"]) + prepared["b4"]
    return out[:, :action_dim]


if __name__ == "__main__":
    key = jax.random.PRNGKey(0)
    state_dim, action_dim = 16, 8

    pkey, skey, akey = jax.random.split(key, 3)
    master = init_critic_params(pkey, state_dim, action_dim)
    prepared = prepare_params(master, state_dim)

    # --- small-batch check (single grid step) -------------------------------
    batch = 8
    state = jax.random.normal(skey, (batch, state_dim), jnp.float32)
    action = jax.random.normal(akey, (batch, action_dim), jnp.float32)

    out = jax.block_until_ready(critic_forward(state, action, prepared))
    ref = critic_ref(state, action, prepared, action_dim)
    assert out.shape == (batch, action_dim), out.shape
    # bf16 matmul inputs (layers 2-4) with f32 accumulation -> modest tolerance.
    assert jnp.allclose(out, ref, atol=2e-2, rtol=2e-2), float(
        jnp.max(jnp.abs(out - ref)))

    # --- multi-step grid + ragged batch check (2 grid steps, tail padded) ---
    batch2 = 160
    s2 = jax.random.normal(jax.random.fold_in(skey, 1),
                           (batch2, state_dim), jnp.float32)
    a2 = jax.random.normal(jax.random.fold_in(akey, 1),
                           (batch2, action_dim), jnp.float32)
    out2 = jax.block_until_ready(critic_forward(s2, a2, prepared))
    ref2 = critic_ref(s2, a2, prepared, action_dim)
    assert out2.shape == (batch2, action_dim), out2.shape
    assert jnp.allclose(out2, ref2, atol=2e-2, rtol=2e-2), float(
        jnp.max(jnp.abs(out2 - ref2)))

    print("KERNEL_OK")
</pallas_src>

<mosaic_0001>
module attributes {stable_mosaic.version = 11 : i64} {
  func.func @critic_kernel(%arg0: i32, %arg1: memref<128x16xf32, #tpu.memory_space<vmem>>, %arg2: memref<128x8xf32, #tpu.memory_space<vmem>>, %arg3: memref<16x256xf32, #tpu.memory_space<vmem>>, %arg4: memref<8x256xf32, #tpu.memory_space<vmem>>, %arg5: memref<1x256xf32, #tpu.memory_space<vmem>>, %arg6: memref<256x128xbf16, #tpu.memory_space<vmem>>, %arg7: memref<1x128xf32, #tpu.memory_space<vmem>>, %arg8: memref<128x64xbf16, #tpu.memory_space<vmem>>, %arg9: memref<1x64xf32, #tpu.memory_space<vmem>>, %arg10: memref<64x128xbf16, #tpu.memory_space<vmem>>, %arg11: memref<1x128xf32, #tpu.memory_space<vmem>>, %arg12: memref<128x128xf32, #tpu.memory_space<vmem>>) attributes {dimension_semantics = [#tpu.dimension_semantics<parallel>], iteration_bounds = array<i64: 1>, scalar_prefetch = 0 : i64, scratch_operands = 0 : i64, tpu.core_type = #tpu.core_type<tc>, window_params = [{transform_indices = @transform_0, window_bounds = array<i64: 128, 16>}, {transform_indices = @transform_1, window_bounds = array<i64: 128, 8>}, {pipeline_mode = #tpu.pipeline_mode<synchronous>, transform_indices = @transform_2, window_bounds = array<i64: 16, 256>}, {pipeline_mode = #tpu.pipeline_mode<synchronous>, transform_indices = @transform_3, window_bounds = array<i64: 8, 256>}, {pipeline_mode = #tpu.pipeline_mode<synchronous>, transform_indices = @transform_4, window_bounds = array<i64: 1, 256>}, {pipeline_mode = #tpu.pipeline_mode<synchronous>, transform_indices = @transform_5, window_bounds = array<i64: 256, 128>}, {pipeline_mode = #tpu.pipeline_mode<synchronous>, transform_indices = @transform_6, window_bounds = array<i64: 1, 128>}, {pipeline_mode = #tpu.pipeline_mode<synchronous>, transform_indices = @transform_7, window_bounds = array<i64: 128, 64>}, {pipeline_mode = #tpu.pipeline_mode<synchronous>, transform_indices = @transform_8, window_bounds = array<i64: 1, 64>}, {pipeline_mode = #tpu.pipeline_mode<synchronous>, transform_indices = @transform_9, window_bounds = array<i64: 64, 128>}, {pipeline_mode = #tpu.pipeline_mode<synchronous>, transform_indices = @transform_10, window_bounds = array<i64: 1, 128>}, {transform_indices = @transform_11, window_bounds = array<i64: 128, 128>}]} {
    %c0 = arith.constant 0 : index
    %c0_0 = arith.constant 0 : index
    %0 = vector.load %arg1[%c0, %c0_0] : memref<128x16xf32, #tpu.memory_space<vmem>>, vector<128x16xf32>
    %c0_1 = arith.constant 0 : index
    %c0_2 = arith.constant 0 : index
    %1 = vector.load %arg3[%c0_1, %c0_2] : memref<16x256xf32, #tpu.memory_space<vmem>>, vector<16x256xf32>
    %cst = arith.constant dense<0.000000e+00> : vector<128x256xf32>
    %2 = tpu.matmul %0, %1, %cst {dimension_numbers = #tpu.dot_dimension_numbers<[1], [0], [0], [1], [0, 0, 1, 1], [], []>} : vector<128x16xf32>, vector<16x256xf32>, vector<128x256xf32> -> vector<128x256xf32>
    %c0_3 = arith.constant 0 : index
    %c0_4 = arith.constant 0 : index
    %3 = vector.load %arg2[%c0_3, %c0_4] : memref<128x8xf32, #tpu.memory_space<vmem>>, vector<128x8xf32>
    %c0_5 = arith.constant 0 : index
    %c0_6 = arith.constant 0 : index
    %4 = vector.load %arg4[%c0_5, %c0_6] : memref<8x256xf32, #tpu.memory_space<vmem>>, vector<8x256xf32>
    %cst_7 = arith.constant dense<0.000000e+00> : vector<128x256xf32>
    %5 = tpu.matmul %3, %4, %cst_7 {dimension_numbers = #tpu.dot_dimension_numbers<[1], [0], [0], [1], [0, 0, 1, 1], [], []>} : vector<128x8xf32>, vector<8x256xf32>, vector<128x256xf32> -> vector<128x256xf32>
    %6 = arith.addf %2, %5 : vector<128x256xf32>
    %c0_8 = arith.constant 0 : index
    %c0_9 = arith.constant 0 : index
    %7 = vector.load %arg5[%c0_8, %c0_9] : memref<1x256xf32, #tpu.memory_space<vmem>>, vector<1x256xf32>
    %8 = vector.broadcast %7 : vector<1x256xf32> to vector<128x256xf32>
    %9 = arith.addf %6, %8 : vector<128x256xf32>
    %cst_10 = arith.constant 0.000000e+00 : f32
    %10 = vector.broadcast %cst_10 : f32 to vector<128x256xf32>
    %11 = arith.maximumf %9, %10 : vector<128x256xf32>
    %12 = arith.truncf %11 : vector<128x256xf32> to vector<128x256xbf16>
    %c0_11 = arith.constant 0 : index
    %c0_12 = arith.constant 0 : index
    %13 = vector.load %arg6[%c0_11, %c0_12] : memref<256x128xbf16, #tpu.memory_space<vmem>>, vector<256x128xbf16>
    %cst_13 = arith.constant dense<0.000000e+00> : vector<128x128xf32>
    %14 = tpu.matmul %12, %13, %cst_13 {dimension_numbers = #tpu.dot_dimension_numbers<[1], [0], [0], [1], [0, 0, 1, 1], [], []>} : vector<128x256xbf16>, vector<256x128xbf16>, vector<128x128xf32> -> vector<128x128xf32>
    %c0_14 = arith.constant 0 : index
    %c0_15 = arith.constant 0 : index
    %15 = vector.load %arg7[%c0_14, %c0_15] : memref<1x128xf32, #tpu.memory_space<vmem>>, vector<1x128xf32>
    %16 = vector.broadcast %15 : vector<1x128xf32> to vector<128x128xf32>
    %17 = arith.addf %14, %16 : vector<128x128xf32>
    %cst_16 = arith.constant 0.000000e+00 : f32
    %18 = vector.broadcast %cst_16 : f32 to vector<128x128xf32>
    %19 = arith.maximumf %17, %18 : vector<128x128xf32>
    %20 = arith.truncf %19 : vector<128x128xf32> to vector<128x128xbf16>
    %c0_17 = arith.constant 0 : index
    %c0_18 = arith.constant 0 : index
    %21 = vector.load %arg8[%c0_17, %c0_18] : memref<128x64xbf16, #tpu.memory_space<vmem>>, vector<128x64xbf16>
    %cst_19 = arith.constant dense<0.000000e+00> : vector<128x64xf32>
    %22 = tpu.matmul %20, %21, %cst_19 {dimension_numbers = #tpu.dot_dimension_numbers<[1], [0], [0], [1], [0, 0, 1, 1], [], []>} : vector<128x128xbf16>, vector<128x64xbf16>, vector<128x64xf32> -> vector<128x64xf32>
    %c0_20 = arith.constant 0 : index
    %c0_21 = arith.constant 0 : index
    %23 = vector.load %arg9[%c0_20, %c0_21] : memref<1x64xf32, #tpu.memory_space<vmem>>, vector<1x64xf32>
    %24 = vector.broadcast %23 : vector<1x64xf32> to vector<128x64xf32>
    %25 = arith.addf %22, %24 : vector<128x64xf32>
    %cst_22 = arith.constant 0.000000e+00 : f32
    %26 = vector.broadcast %cst_22 : f32 to vector<128x64xf32>
    %27 = arith.maximumf %25, %26 : vector<128x64xf32>
    %28 = arith.truncf %27 : vector<128x64xf32> to vector<128x64xbf16>
    %c0_23 = arith.constant 0 : index
    %c0_24 = arith.constant 0 : index
    %29 = vector.load %arg10[%c0_23, %c0_24] : memref<64x128xbf16, #tpu.memory_space<vmem>>, vector<64x128xbf16>
    %cst_25 = arith.constant dense<0.000000e+00> : vector<128x128xf32>
    %30 = tpu.matmul %28, %29, %cst_25 {dimension_numbers = #tpu.dot_dimension_numbers<[1], [0], [0], [1], [0, 0, 1, 1], [], []>} : vector<128x64xbf16>, vector<64x128xbf16>, vector<128x128xf32> -> vector<128x128xf32>
    %c0_26 = arith.constant 0 : index
    %c0_27 = arith.constant 0 : index
    %31 = vector.load %arg11[%c0_26, %c0_27] : memref<1x128xf32, #tpu.memory_space<vmem>>, vector<1x128xf32>
    %32 = vector.broadcast %31 : vector<1x128xf32> to vector<128x128xf32>
    %33 = arith.addf %30, %32 : vector<128x128xf32>
    %c0_28 = arith.constant 0 : index
    %c0_29 = arith.constant 0 : index
    %34 = vector.load %arg12[%c0_28, %c0_29] : memref<128x128xf32, #tpu.memory_space<vmem>>, vector<128x128xf32>
    tpu.vector_store %arg12[%c0_28, %c0_29], %33 {strides = array<i32>} : memref<128x128xf32, #tpu.memory_space<vmem>>, vector<128x128xf32>,
    return
  }
  func.func @transform_0(%arg0: i32) -> (i32, i32) {
    %c0_i32 = arith.constant 0 : i32
    %c0_i32_0 = arith.constant 0 : i32
    return %arg0, %c0_i32 : i32, i32
  }
  func.func @transform_1(%arg0: i32) -> (i32, i32) {
    %c0_i32 = arith.constant 0 : i32
    %c0_i32_0 = arith.constant 0 : i32
    return %arg0, %c0_i32 : i32, i32
  }
  func.func @transform_2(%arg0: i32) -> (i32, i32) {
    %c0_i32 = arith.constant 0 : i32
    %c0_i32_0 = arith.constant 0 : i32
    %c0_i32_1 = arith.constant 0 : i32
    return %c0_i32, %c0_i32_0 : i32, i32
  }
  func.func @transform_3(%arg0: i32) -> (i32, i32) {
    %c0_i32 = arith.constant 0 : i32
    %c0_i32_0 = arith.constant 0 : i32
    %c0_i32_1 = arith.constant 0 : i32
    return %c0_i32, %c0_i32_0 : i32, i32
  }
  func.func @transform_4(%arg0: i32) -> (i32, i32) {
    %c0_i32 = arith.constant 0 : i32
    %c0_i32_0 = arith.constant 0 : i32
    %c0_i32_1 = arith.constant 0 : i32
    return %c0_i32, %c0_i32_0 : i32, i32
  }
  func.func @transform_5(%arg0: i32) -> (i32, i32) {
    %c0_i32 = arith.constant 0 : i32
    %c0_i32_0 = arith.constant 0 : i32
    %c0_i32_1 = arith.constant 0 : i32
    return %c0_i32, %c0_i32_0 : i32, i32
  }
  func.func @transform_6(%arg0: i32) -> (i32, i32) {
    %c0_i32 = arith.constant 0 : i32
    %c0_i32_0 = arith.constant 0 : i32
    %c0_i32_1 = arith.constant 0 : i32
    return %c0_i32, %c0_i32_0 : i32, i32
  }
  func.func @transform_7(%arg0: i32) -> (i32, i32) {
    %c0_i32 = arith.constant 0 : i32
    %c0_i32_0 = arith.constant 0 : i32
    %c0_i32_1 = arith.constant 0 : i32
    return %c0_i32, %c0_i32_0 : i32, i32
  }
  func.func @transform_8(%arg0: i32) -> (i32, i32) {
    %c0_i32 = arith.constant 0 : i32
    %c0_i32_0 = arith.constant 0 : i32
    %c0_i32_1 = arith.constant 0 : i32
    return %c0_i32, %c0_i32_0 : i32, i32
  }
  func.func @transform_9(%arg0: i32) -> (i32, i32) {
    %c0_i32 = arith.constant 0 : i32
    %c0_i32_0 = arith.constant 0 : i32
    %c0_i32_1 = arith.constant 0 : i32
    return %c0_i32, %c0_i32_0 : i32, i32
  }
  func.func @transform_10(%arg0: i32) -> (i32, i32) {
    %c0_i32 = arith.constant 0 : i32
    %c0_i32_0 = arith.constant 0 : i32
    %c0_i32_1 = arith.constant 0 : i32
    return %c0_i32, %c0_i32_0 : i32, i32
  }
  func.func @transform_11(%arg0: i32) -> (i32, i32) {
    %c0_i32 = arith.constant 0 : i32
    %c0_i32_0 = arith.constant 0 : i32
    return %arg0, %c0_i32 : i32, i32
  }
}

</mosaic_0001>

<llo_original>
// kernel: _critic_forward_padded.1
$region0: #{_critic_forward_padded.1}
  #allocation0 [shape = 'u32[]', space=smem, size = 0x4, offset = 0x4, fixed_abs, tag = 'smem constant byte address 0x4 - core index']
  #allocation1 [shape = 'u32[144,128]{1,0:T(1,128)}', space=vmem, size = 0x12000, scoped, tag = 'internal scratch']
  %s0 = inlined_call_operand.vmem [shape: f32[128,16], index: 0, kind: input, shape index: {}]
  %s1 = inlined_call_operand.vmem [shape: f32[128,8], index: 1, kind: input, shape index: {}]
  %s2 = inlined_call_operand.vmem [shape: f32[16,256], index: 2, kind: input, shape index: {}]
  %s3 = inlined_call_operand.vmem [shape: f32[8,256], index: 3, kind: input, shape index: {}]
  %s4 = inlined_call_operand.vmem [shape: f32[1,256], index: 4, kind: input, shape index: {}]
  %s5 = inlined_call_operand.vmem [shape: bf16[256,128], index: 5, kind: input, shape index: {}]
  %s6 = inlined_call_operand.vmem [shape: f32[1,128], index: 6, kind: input, shape index: {}]
  %s7 = inlined_call_operand.vmem [shape: bf16[128,64], index: 7, kind: input, shape index: {}]
  %s8 = inlined_call_operand.vmem [shape: f32[1,64], index: 8, kind: input, shape index: {}]
  %s9 = inlined_call_operand.vmem [shape: bf16[64,128], index: 9, kind: input, shape index: {}]
  %s10 = inlined_call_operand.vmem [shape: f32[1,128], index: 10, kind: input, shape index: {}]
  %s11 = inlined_call_operand.hbm [shape: f32[128,128], index: 11, kind: output, shape index: {}]
  %s12 = sld [smem:[#allocation0]]
  $region54: #{_critic_forward_padded.1} parent=0
    _
  %s14 = ssub.s32 1, %s12
  %s15 = scalar_select 0, %s14, %s12
  $region1: #{_critic_forward_padded.1} parent=0
    #allocation2 [shape = 'u8[65536]{0}', space=vmem, size = 0x10000, scoped, tag = 'output window, operand 0, single buffered']
    #allocation3 [shape = 's32[1]{0}', space=sflag, size = 0x4, scoped, tag = 'scoped memory for _critic_forward_padded.1']
    %16 = vsyncpa [#allocation3], 0
    // Predicated region
    $region2: #{_critic_forward_padded.1} parent=1 // pred_check
      _
    $region3: #{_critic_forward_padded.1} parent=1 // pred_check_branch
      %18 = sbr.rel (0) target = $region5
    $region4: #{_critic_forward_padded.1} parent=1 // pred_region
      _
    $region5: #{_critic_forward_padded.1} parent=1 // pred_fallthru
      _
    // Predicated region
    $region6: #{_critic_forward_padded.1} parent=1 // pred_check
      _
    $region7: #{_critic_forward_padded.1} parent=1 // pred_check_branch
      %20 = sbr.rel (0) target = $region9
    $region8: #{_critic_forward_padded.1} parent=1 // pred_region
      _
    $region9: #{_critic_forward_padded.1} parent=1 // pred_fallthru
      _
    // Predicated region
    $region10: #{_critic_forward_padded.1} parent=1 // pred_check
      _
    $region11: #{_critic_forward_padded.1} parent=1 // pred_check_branch
      %22 = sbr.rel (0) target = $region13
    $region12: #{_critic_forward_padded.1} parent=1 // pred_region
      _
    $region13: #{_critic_forward_padded.1} parent=1 // pred_fallthru
      _
    // Predicated region
    $region14: #{_critic_forward_padded.1} parent=1 // pred_check
      _
    $region15: #{_critic_forward_padded.1} parent=1 // pred_check_branch
      %24 = sbr.rel (0) target = $region17
    $region16: #{_critic_forward_padded.1} parent=1 // pred_region
      _
    $region17: #{_critic_forward_padded.1} parent=1 // pred_fallthru
      _
    // Predicated region
    $region18: #{_critic_forward_padded.1} parent=1 // pred_check
      _
    $region19: #{_critic_forward_padded.1} parent=1 // pred_check_branch
      %26 = sbr.rel (0) target = $region21
    $region20: #{_critic_forward_padded.1} parent=1 // pred_region
      _
    $region21: #{_critic_forward_padded.1} parent=1 // pred_fallthru
      _
    // Predicated region
    $region22: #{_critic_forward_padded.1} parent=1 // pred_check
      _
    $region23: #{_critic_forward_padded.1} parent=1 // pred_check_branch
      %28 = sbr.rel (0) target = $region25
    $region24: #{_critic_forward_padded.1} parent=1 // pred_region
      _
    $region25: #{_critic_forward_padded.1} parent=1 // pred_fallthru
      _
    // Predicated region
    $region26: #{_critic_forward_padded.1} parent=1 // pred_check
      _
    $region27: #{_critic_forward_padded.1} parent=1 // pred_check_branch
      %30 = sbr.rel (0) target = $region29
    $region28: #{_critic_forward_padded.1} parent=1 // pred_region
      _
    $region29: #{_critic_forward_padded.1} parent=1 // pred_fallthru
      _
    // Predicated region
    $region30: #{_critic_forward_padded.1} parent=1 // pred_check
      _
    $region31: #{_critic_forward_padded.1} parent=1 // pred_check_branch
      %32 = sbr.rel (0) target = $region33
    $region32: #{_critic_forward_padded.1} parent=1 // pred_region
      _
    $region33: #{_critic_forward_padded.1} parent=1 // pred_fallthru
      _
    // Predicated region
    $region34: #{_critic_forward_padded.1} parent=1 // pred_check
      _
    $region35: #{_critic_forward_padded.1} parent=1 // pred_check_branch
      %34 = sbr.rel (0) target = $region37
    $region36: #{_critic_forward_padded.1} parent=1 // pred_region
      _
    $region37: #{_critic_forward_padded.1} parent=1 // pred_fallthru
      _
    // Predicated region
    $region38: #{_critic_forward_padded.1} parent=1 // pred_check
      _
    $region39: #{_critic_forward_padded.1} parent=1 // pred_check_branch
      %36 = sbr.rel (0) target = $region41
    $region40: #{_critic_forward_padded.1} parent=1 // pred_region
      _
    $region41: #{_critic_forward_padded.1} parent=1 // pred_fallthru
      _
    // Predicated region
    $region42: #{_critic_forward_padded.1} parent=1 // pred_check
      _
    $region43: #{_critic_forward_padded.1} parent=1 // pred_check_branch
      %38 = sbr.rel (0) target = $region45
    $region44: #{_critic_forward_padded.1} parent=1 // pred_region
      _
    $region45: #{_critic_forward_padded.1} parent=1 // pred_fallthru
      _
    %v40 = vld [vmem:[%s0] sm:$0xff]
    %v41 = vld [vmem:[%s0 + $0x8] sm:$0xff]
    %v42 = vld [vmem:[%s0 + $0x10] sm:$0xff]
    %v43 = vld [vmem:[%s0 + $0x18] sm:$0xff]
    %v44 = vld [vmem:[%s0 + $0x20] sm:$0xff]
    %v45 = vld [vmem:[%s0 + $0x28] sm:$0xff]
    %v46 = vld [vmem:[%s0 + $0x30] sm:$0xff]
    %v47 = vld [vmem:[%s0 + $0x38] sm:$0xff]
    %v48 = vld [vmem:[%s0 + $0x40] sm:$0xff]
    %v49 = vld [vmem:[%s0 + $0x48] sm:$0xff]
    %v50 = vld [vmem:[%s0 + $0x50] sm:$0xff]
    %v51 = vld [vmem:[%s0 + $0x58] sm:$0xff]
    %v52 = vld [vmem:[%s0 + $0x60] sm:$0xff]
    %v53 = vld [vmem:[%s0 + $0x68] sm:$0xff]
    %v54 = vld [vmem:[%s0 + $0x70] sm:$0xff]
    %v55 = vld [vmem:[%s0 + $0x78] sm:$0xff]
    %v56 = vld [vmem:[%s2] sm:$0xff]
    %v57 = vld [vmem:[%s2 + $0x8] sm:$0xff]
    %v58 = vld [vmem:[%s2 + $0x10] sm:$0xff]
    %v59 = vld [vmem:[%s2 + $0x18] sm:$0xff]
    %v60 = vld [vmem:[%s1] sm:$0xff]
    %v61 = vld [vmem:[%s1 + $0x8] sm:$0xff]
    %v62 = vld [vmem:[%s1 + $0x10] sm:$0xff]
    %v63 = vld [vmem:[%s1 + $0x18] sm:$0xff]
    %v64 = vld [vmem:[%s1 + $0x20] sm:$0xff]
    %v65 = vld [vmem:[%s1 + $0x28] sm:$0xff]
    %v66 = vld [vmem:[%s1 + $0x30] sm:$0xff]
    %v67 = vld [vmem:[%s1 + $0x38] sm:$0xff]
    %v68 = vld [vmem:[%s1 + $0x40] sm:$0xff]
    %v69 = vld [vmem:[%s1 + $0x48] sm:$0xff]
    %v70 = vld [vmem:[%s1 + $0x50] sm:$0xff]
    %v71 = vld [vmem:[%s1 + $0x58] sm:$0xff]
    %v72 = vld [vmem:[%s1 + $0x60] sm:$0xff]
    %v73 = vld [vmem:[%s1 + $0x68] sm:$0xff]
    %v74 = vld [vmem:[%s1 + $0x70] sm:$0xff]
    %v75 = vld [vmem:[%s1 + $0x78] sm:$0xff]
    %v76 = vld [vmem:[%s3] sm:$0xff]
    %v77 = vld [vmem:[%s3 + $0x8] sm:$0xff]
    %vm78 = vcmask 64512
    %v80 = vsel %vm78, %v60, 0
    %v83 = vsel %vm78, %v61, 0
    %v86 = vsel %vm78, %v62, 0
    %v89 = vsel %vm78, %v63, 0
    %v92 = vsel %vm78, %v64, 0
    %v95 = vsel %vm78, %v65, 0
    %v98 = vsel %vm78, %v66, 0
    %v101 = vsel %vm78, %v67, 0
    %v104 = vsel %vm78, %v68, 0
    %v107 = vsel %vm78, %v69, 0
    %v110 = vsel %vm78, %v70, 0
    %v113 = vsel %vm78, %v71, 0
    %v116 = vsel %vm78, %v72, 0
    %v119 = vsel %vm78, %v73, 0
    %v122 = vsel %vm78, %v74, 0
    %v125 = vsel %vm78, %v75, 0
    %127 = vmatprep.subr.mxu0 %v77
    %128 = vmatpush1.msra.mxu0 %v76
    %129 = vmatprep.subr.mxu0 0.0
    %130 = vmatpush1.msra.mxu0 0.0
    %131 = vmatprep.subr.mxu0 0.0
    %132 = vmatpush1.msra.mxu0 0.0
    %133 = vmatprep.subr.mxu0 0.0
    %134 = vmatpush1.msra.mxu0 0.0
    %135 = vmatprep.subr.mxu0 0.0
    %136 = vmatpush1.msra.mxu0 0.0
    %137 = vmatprep.subr.mxu0 0.0
    %138 = vmatpush1.msra.mxu0 0.0
    %139 = vmatprep.subr.mxu0 0.0
    %140 = vmatpush1.msra.mxu0 0.0
    %141 = vmatprep.subr.mxu0 0.0
    %142 = vmatpush1.msra.mxu0 0.0
    %143 = vmatprep.subr.mxu0 0.0
    %144 = vmatpush1.msra.mxu0 0.0
    %145 = vmatprep.subr.mxu0 0.0
    %146 = vmatpush1.msra.mxu0 0.0
    %147 = vmatprep.subr.mxu0 0.0
    %148 = vmatpush1.msra.mxu0 0.0
    %149 = vmatprep.subr.mxu0 0.0
    %150 = vmatpush1.msra.mxu0 0.0
    %151 = vmatprep.subr.mxu0 0.0
    %152 = vmatpush1.msra.mxu0 0.0
    %153 = vmatprep.subr.mxu0 0.0
    %154 = vmatpush1.msra.mxu0 0.0
    %155 = vmatprep.subr.mxu0 0.0
    %156 = vmatpush1.msra.mxu0 0.0
    %157 = vmatprep.subr.mxu0 0.0
    %158 = vmatpush1.msra.mxu0 0.0
    %159 = vmatprep.subr.mxu0 0.0
    %160 = vmatpush1.msra.mxu0 0.0
    %161 = vmatprep.subr.mxu0 0.0
    %162 = vmatpush1.msra.mxu0 0.0
    %163 = vmatprep.subr.mxu0 0.0
    %164 = vmatpush1.msra.mxu0 0.0
    %165 = vmatprep.subr.mxu0 0.0
    %166 = vmatpush1.msra.mxu0 0.0
    %167 = vmatprep.subr.mxu0 0.0
    %168 = vmatpush1.msra.mxu0 0.0
    %169 = vmatprep.subr.mxu0 0.0
    %170 = vmatpush1.msra.mxu0 0.0
    %171 = vmatprep.subr.mxu0 0.0
    %172 = vmatpush1.msra.mxu0 0.0
    %173 = vmatprep.subr.mxu0 0.0
    %174 = vmatpush1.msra.mxu0 0.0
    %175 = vmatprep.subr.mxu0 0.0
    %176 = vmatpush1.msra.mxu0 0.0
    %177 = vmatprep.subr.mxu0 0.0
    %178 = vmatpush1.msra.mxu0 0.0
    %179 = vmatprep.subr.mxu0 0.0
    %180 = vmatpush1.msra.mxu0 0.0
    %181 = vmatprep.subr.mxu0 0.0
    %182 = vmatpush1.msra.mxu0 0.0
    %183 = vmatprep.subr.mxu0 0.0
    %184 = vmatpush1.msra.mxu0 0.0
    %185 = vmatprep.subr.mxu0 0.0
    %186 = vmatpush1.msra.mxu0 0.0
    %187 = vmatprep.subr.mxu0 0.0
    %188 = vmatpush1.msra.mxu0 0.0
    %189 = vmatprep.subr.mxu0 0.0
    %190 = vmatpush1.msra.mxu0 0.0
    %191 = vmatprep.mubr.f32.mxu0 0.0
    %192 = vmatmul.mubr.f32.gmra.mrb[0].mxu0 %v80
    %v193 = vpop.f32.mrb[0].mxu0
    %v194 = vadd.f32 0.0, %v193
    %v195 = vpop.f32.mrb[0].mxu0
    %v196 = vadd.f32 0.0, %v195
    %197 = vmatprep.mubr.f32.mxu0 0.0
    %198 = vmatmul.mubr.f32.gmra.mrb[0].mxu0 %v83
    %v199 = vpop.f32.mrb[0].mxu0
    %v200 = vadd.f32 0.0, %v199
    %v201 = vpop.f32.mrb[0].mxu0
    %v202 = vadd.f32 0.0, %v201
    %203 = vmatprep.mubr.f32.mxu0 0.0
    %204 = vmatmul.mubr.f32.gmra.mrb[0].mxu0 %v86
    %v205 = vpop.f32.mrb[0].mxu0
    %v206 = vadd.f32 0.0, %v205
    %v207 = vpop.f32.mrb[0].mxu0
    %v208 = vadd.f32 0.0, %v207
    %209 = vmatprep.mubr.f32.mxu0 0.0
    %210 = vmatmul.mubr.f32.gmra.mrb[0].mxu0 %v89
    %v211 = vpop.f32.mrb[0].mxu0
    %v212 = vadd.f32 0.0, %v211
    %v213 = vpop.f32.mrb[0].mxu0
    %v214 = vadd.f32 0.0, %v213
    %215 = vmatprep.mubr.f32.mxu0 0.0
    %216 = vmatmul.mubr.f32.gmra.mrb[0].mxu0 %v92
    %v217 = vpop.f32.mrb[0].mxu0
    %v218 = vadd.f32 0.0, %v217
    %v219 = vpop.f32.mrb[0].mxu0
    %v220 = vadd.f32 0.0, %v219
    %221 = vmatprep.mubr.f32.mxu0 0.0
    %222 = vmatmul.mubr.f32.gmra.mrb[0].mxu0 %v95
    %v223 = vpop.f32.mrb[0].mxu0
    %v224 = vadd.f32 0.0, %v223
    %v225 = vpop.f32.mrb[0].mxu0
    %v226 = vadd.f32 0.0, %v225
    %227 = vmatprep.mubr.f32.mxu0 0.0
    %228 = vmatmul.mubr.f32.gmra.mrb[0].mxu0 %v98
    %v229 = vpop.f32.mrb[0].mxu0
    %v230 = vadd.f32 0.0, %v229
    %v231 = vpop.f32.mrb[0].mxu0
    %v232 = vadd.f32 0.0, %v231
    %233 = vmatprep.mubr.f32.mxu0 0.0
    %234 = vmatmul.mubr.f32.gmra.mrb[0].mxu0 %v101
    %v235 = vpop.f32.mrb[0].mxu0
    %v236 = vadd.f32 0.0, %v235
    %v237 = vpop.f32.mrb[0].mxu0
    %v238 = vadd.f32 0.0, %v237
    %239 = vmatprep.mubr.f32.mxu0 0.0
    %240 = vmatmul.mubr.f32.gmra.mrb[0].mxu0 %v104
    %v241 = vpop.f32.mrb[0].mxu0
    %v242 = vadd.f32 0.0, %v241
    %v243 = vpop.f32.mrb[0].mxu0
    %v244 = vadd.f32 0.0, %v243
    %245 = vmatprep.mubr.f32.mxu0 0.0
    %246 = vmatmul.mubr.f32.gmra.mrb[0].mxu0 %v107
    %v247 = vpop.f32.mrb[0].mxu0
    %v248 = vadd.f32 0.0, %v247
    %v249 = vpop.f32.mrb[0].mxu0
    %v250 = vadd.f32 0.0, %v249
    %251 = vmatprep.mubr.f32.mxu0 0.0
    %252 = vmatmul.mubr.f32.gmra.mrb[0].mxu0 %v110
    %v253 = vpop.f32.mrb[0].mxu0
    %v254 = vadd.f32 0.0, %v253
    %v255 = vpop.f32.mrb[0].mxu0
    %v256 = vadd.f32 0.0, %v255
    %257 = vmatprep.mubr.f32.mxu0 0.0
    %258 = vmatmul.mubr.f32.gmra.mrb[0].mxu0 %v113
    %v259 = vpop.f32.mrb[0].mxu0
    %v260 = vadd.f32 0.0, %v259
    %v261 = vpop.f32.mrb[0].mxu0
    %v262 = vadd.f32 0.0, %v261
    %263 = vmatprep.mubr.f32.mxu0 0.0
    %264 = vmatmul.mubr.f32.gmra.mrb[0].mxu0 %v116
    %v265 = vpop.f32.mrb[0].mxu0
    %v266 = vadd.f32 0.0, %v265
    %v267 = vpop.f32.mrb[0].mxu0
    %v268 = vadd.f32 0.0, %v267
    %269 = vmatprep.mubr.f32.mxu0 0.0
    %270 = vmatmul.mubr.f32.gmra.mrb[0].mxu0 %v119
    %v271 = vpop.f32.mrb[0].mxu0
    %v272 = vadd.f32 0.0, %v271
    %v273 = vpop.f32.mrb[0].mxu0
    %v274 = vadd.f32 0.0, %v273
    %275 = vmatprep.mubr.f32.mxu0 0.0
    %276 = vmatmul.mubr.f32.gmra.mrb[0].mxu0 %v122
    %v277 = vpop.f32.mrb[0].mxu0
    %v278 = vadd.f32 0.0, %v277
    %v279 = vpop.f32.mrb[0].mxu0
    %v280 = vadd.f32 0.0, %v279
    %281 = vmatprep.mubr.f32.mxu0 0.0
    %282 = vmatmul.mubr.f32.gmra.mrb[0].mxu0 %v125
    %v283 = vpop.f32.mrb[0].mxu0
    %v284 = vadd.f32 0.0, %v283
    %v285 = vpop.f32.mrb[0].mxu0
    %v286 = vadd.f32 0.0, %v285
    %287 = vdwg.mxu0
    %vm288 = vcmask 130048
    %v290 = vsel %vm288, %v40, 0
    %v293 = vsel %vm288, %v41, 0
    %v296 = vsel %vm288, %v42, 0
    %v299 = vsel %vm288, %v43, 0
    %v302 = vsel %vm288, %v44, 0
    %v305 = vsel %vm288, %v45, 0
    %v308 = vsel %vm288, %v46, 0
    %v311 = vsel %vm288, %v47, 0
    %v314 = vsel %vm288, %v48, 0
    %v317 = vsel %vm288, %v49, 0
    %v320 = vsel %vm288, %v50, 0
    %v323 = vsel %vm288, %v51, 0
    %v326 = vsel %vm288, %v52, 0
    %v329 = vsel %vm288, %v53, 0
    %v332 = vsel %vm288, %v54, 0
    %v335 = vsel %vm288, %v55, 0
    %337 = vmatprep.subr.mxu0 %v57
    %338 = vmatpush1.msra.mxu0 %v56
    %339 = vmatprep.subr.mxu0 %v59
    %340 = vmatpush1.msra.mxu0 %v58
    %341 = vmatprep.subr.mxu0 0.0
    %342 = vmatpush1.msra.mxu0 0.0
    %343 = vmatprep.subr.mxu0 0.0
    %344 = vmatpush1.msra.mxu0 0.0
    %345 = vmatprep.subr.mxu0 0.0
    %346 = vmatpush1.msra.mxu0 0.0
    %347 = vmatprep.subr.mxu0 0.0
    %348 = vmatpush1.msra.mxu0 0.0
    %349 = vmatprep.subr.mxu0 0.0
    %350 = vmatpush1.msra.mxu0 0.0
    %351 = vmatprep.subr.mxu0 0.0
    %352 = vmatpush1.msra.mxu0 0.0
    %353 = vmatprep.subr.mxu0 0.0
    %354 = vmatpush1.msra.mxu0 0.0
    %355 = vmatprep.subr.mxu0 0.0
    %356 = vmatpush1.msra.mxu0 0.0
    %357 = vmatprep.subr.mxu0 0.0
    %358 = vmatpush1.msra.mxu0 0.0
    %359 = vmatprep.subr.mxu0 0.0
    %360 = vmatpush1.msra.mxu0 0.0
    %361 = vmatprep.subr.mxu0 0.0
    %362 = vmatpush1.msra.mxu0 0.0
    %363 = vmatprep.subr.mxu0 0.0
    %364 = vmatpush1.msra.mxu0 0.0
    %365 = vmatprep.subr.mxu0 0.0
    %366 = vmatpush1.msra.mxu0 0.0
    %367 = vmatprep.subr.mxu0 0.0
    %368 = vmatpush1.msra.mxu0 0.0
    %369 = vmatprep.subr.mxu0 0.0
    %370 = vmatpush1.msra.mxu0 0.0
    %371 = vmatprep.subr.mxu0 0.0
    %372 = vmatpush1.msra.mxu0 0.0
    %373 = vmatprep.subr.mxu0 0.0
    %374 = vmatpush1.msra.mxu0 0.0
    %375 = vmatprep.subr.mxu0 0.0
    %376 = vmatpush1.msra.mxu0 0.0
    %377 = vmatprep.subr.mxu0 0.0
    %378 = vmatpush1.msra.mxu0 0.0
    %379 = vmatprep.subr.mxu0 0.0
    %380 = vmatpush1.msra.mxu0 0.0
    %381 = vmatprep.subr.mxu0 0.0
    %382 = vmatpush1.msra.mxu0 0.0
    %383 = vmatprep.subr.mxu0 0.0
    %384 = vmatpush1.msra.mxu0 0.0
    %385 = vmatprep.subr.mxu0 0.0
    %386 = vmatpush1.msra.mxu0 0.0
    %387 = vmatprep.subr.mxu0 0.0
    %388 = vmatpush1.msra.mxu0 0.0
    %389 = vmatprep.subr.mxu0 0.0
    %390 = vmatpush1.msra.mxu0 0.0
    %391 = vmatprep.subr.mxu0 0.0
    %392 = vmatpush1.msra.mxu0 0.0
    %393 = vmatprep.subr.mxu0 0.0
    %394 = vmatpush1.msra.mxu0 0.0
    %395 = vmatprep.subr.mxu0 0.0
    %396 = vmatpush1.msra.mxu0 0.0
    %397 = vmatprep.subr.mxu0 0.0
    %398 = vmatpush1.msra.mxu0 0.0
    %399 = vmatprep.subr.mxu0 0.0
    %400 = vmatpush1.msra.mxu0 0.0
    %401 = vmatprep.mubr.f32.mxu0 0.0
    %402 = vmatmul.mubr.f32.gmra.mrb[0].mxu0 %v290
    %v403 = vpop.f32.mrb[0].mxu0
    %v404 = vadd.f32 %v194, %v403
    %v405 = vpop.f32.mrb[0].mxu0
    %v406 = vadd.f32 %v196, %v405
    %407 = vmatprep.mubr.f32.mxu0 0.0
    %408 = vmatmul.mubr.f32.gmra.mrb[0].mxu0 %v293
    %v409 = vpop.f32.mrb[0].mxu0
    %v410 = vadd.f32 %v200, %v409
    %v411 = vpop.f32.mrb[0].mxu0
    %v412 = vadd.f32 %v202, %v411
    %413 = vmatprep.mubr.f32.mxu0 0.0
    %414 = vmatmul.mubr.f32.gmra.mrb[0].mxu0 %v296
    %v415 = vpop.f32.mrb[0].mxu0
    %v416 = vadd.f32 %v206, %v415
    %v417 = vpop.f32.mrb[0].mxu0
    %v418 = vadd.f32 %v208, %v417
    %419 = vmatprep.mubr.f32.mxu0 0.0
    %420 = vmatmul.mubr.f32.gmra.mrb[0].mxu0 %v299
    %v421 = vpop.f32.mrb[0].mxu0
    %v422 = vadd.f32 %v212, %v421
    %v423 = vpop.f32.mrb[0].mxu0
    %v424 = vadd.f32 %v214, %v423
    %425 = vmatprep.mubr.f32.mxu0 0.0
    %426 = vmatmul.mubr.f32.gmra.mrb[0].mxu0 %v302
    %v427 = vpop.f32.mrb[0].mxu0
    %v428 = vadd.f32 %v218, %v427
    %v429 = vpop.f32.mrb[0].mxu0
    %v430 = vadd.f32 %v220, %v429
    %431 = vmatprep.mubr.f32.mxu0 0.0
    %432 = vmatmul.mubr.f32.gmra.mrb[0].mxu0 %v305
    %v433 = vpop.f32.mrb[0].mxu0
    %v434 = vadd.f32 %v224, %v433
    %v435 = vpop.f32.mrb[0].mxu0
    %v436 = vadd.f32 %v226, %v435
    %437 = vmatprep.mubr.f32.mxu0 0.0
    %438 = vmatmul.mubr.f32.gmra.mrb[0].mxu0 %v308
    %v439 = vpop.f32.mrb[0].mxu0
    %v440 = vadd.f32 %v230, %v439
    %v441 = vpop.f32.mrb[0].mxu0
    %v442 = vadd.f32 %v232, %v441
    %443 = vmatprep.mubr.f32.mxu0 0.0
    %444 = vmatmul.mubr.f32.gmra.mrb[0].mxu0 %v311
    %v445 = vpop.f32.mrb[0].mxu0
    %v446 = vadd.f32 %v236, %v445
    %v447 = vpop.f32.mrb[0].mxu0
    %v448 = vadd.f32 %v238, %v447
    %449 = vmatprep.mubr.f32.mxu0 0.0
    %450 = vmatmul.mubr.f32.gmra.mrb[0].mxu0 %v314
    %v451 = vpop.f32.mrb[0].mxu0
    %v452 = vadd.f32 %v242, %v451
    %v453 = vpop.f32.mrb[0].mxu0
    %v454 = vadd.f32 %v244, %v453
    %455 = vmatprep.mubr.f32.mxu0 0.0
    %456 = vmatmul.mubr.f32.gmra.mrb[0].mxu0 %v317
    %v457 = vpop.f32.mrb[0].mxu0
    %v458 = vadd.f32 %v248, %v457
    %v459 = vpop.f32.mrb[0].mxu0
    %v460 = vadd.f32 %v250, %v459
    %461 = vmatprep.mubr.f32.mxu0 0.0
    %462 = vmatmul.mubr.f32.gmra.mrb[0].mxu0 %v320
    %v463 = vpop.f32.mrb[0].mxu0
    %v464 = vadd.f32 %v254, %v463
    %v465 = vpop.f32.mrb[0].mxu0
    %v466 = vadd.f32 %v256, %v465
    %467 = vmatprep.mubr.f32.mxu0 0.0
    %468 = vmatmul.mubr.f32.gmra.mrb[0].mxu0 %v323
    %v469 = vpop.f32.mrb[0].mxu0
    %v470 = vadd.f32 %v260, %v469
    %v471 = vpop.f32.mrb[0].mxu0
    %v472 = vadd.f32 %v262, %v471
    %473 = vmatprep.mubr.f32.mxu0 0.0
    %474 = vmatmul.mubr.f32.gmra.mrb[0].mxu0 %v326
    %v475 = vpop.f32.mrb[0].mxu0
    %v476 = vadd.f32 %v266, %v475
    %v477 = vpop.f32.mrb[0].mxu0
    %v478 = vadd.f32 %v268, %v477
    %479 = vmatprep.mubr.f32.mxu0 0.0
    %480 = vmatmul.mubr.f32.gmra.mrb[0].mxu0 %v329
    %v481 = vpop.f32.mrb[0].mxu0
    %v482 = vadd.f32 %v272, %v481
    %v483 = vpop.f32.mrb[0].mxu0
    %v484 = vadd.f32 %v274, %v483
    %485 = vmatprep.mubr.f32.mxu0 0.0
    %486 = vmatmul.mubr.f32.gmra.mrb[0].mxu0 %v332
    %v487 = vpop.f32.mrb[0].mxu0
    %v488 = vadd.f32 %v278, %v487
    %v489 = vpop.f32.mrb[0].mxu0
    %v490 = vadd.f32 %v280, %v489
    %491 = vmatprep.mubr.f32.mxu0 0.0
    %492 = vmatmul.mubr.f32.gmra.mrb[0].mxu0 %v335
    %v493 = vpop.f32.mrb[0].mxu0
    %v494 = vadd.f32 %v284, %v493
    %v495 = vpop.f32.mrb[0].mxu0
    %v496 = vadd.f32 %v286, %v495
    %497 = vdwg.mxu0
    %v498 = vld [vmem:[%s4] sm:$0x3]
    %v500 = vlaneseq
    %v501 = vshrl.u32 %v500, 7
    %v502 = vsub.s32 0, %v501
    %v503 = vrot.slane %v498, %v502
    %v504 = vlaneseq
    %v505 = vshrl.u32 %v504, 7
    %v506 = vsub.s32 1, %v505
    %v507 = vrot.slane %v498, %v506
    %v510 = vadd.f32 %v404, %v503
    %v511 = vadd.f32 %v406, %v507
    %v512 = vadd.f32 %v410, %v503
    %v513 = vadd.f32 %v412, %v507
    %v514 = vadd.f32 %v416, %v503
    %v515 = vadd.f32 %v418, %v507
    %v516 = vadd.f32 %v422, %v503
    %v517 = vadd.f32 %v424, %v507
    %v518 = vadd.f32 %v428, %v503
    %v519 = vadd.f32 %v430, %v507
    %v520 = vadd.f32 %v434, %v503
    %v521 = vadd.f32 %v436, %v507
    %v522 = vadd.f32 %v440, %v503
    %v523 = vadd.f32 %v442, %v507
    %v524 = vadd.f32 %v446, %v503
    %v525 = vadd.f32 %v448, %v507
    %v526 = vadd.f32 %v452, %v503
    %v527 = vadd.f32 %v454, %v507
    %v528 = vadd.f32 %v458, %v503
    %v529 = vadd.f32 %v460, %v507
    %v530 = vadd.f32 %v464, %v503
    %v531 = vadd.f32 %v466, %v507
    %v532 = vadd.f32 %v470, %v503
    %v533 = vadd.f32 %v472, %v507
    %v534 = vadd.f32 %v476, %v503
    %v535 = vadd.f32 %v478, %v507
    %v536 = vadd.f32 %v482, %v503
    %v537 = vadd.f32 %v484, %v507
    %v538 = vadd.f32 %v488, %v503
    %v539 = vadd.f32 %v490, %v507
    %v540 = vadd.f32 %v494, %v503
    %v541 = vadd.f32 %v496, %v507
    %v542 = vmax.f32 %v510, 0.0
    %v543 = vmax.f32 %v511, 0.0
    %v544 = vmax.f32 %v512, 0.0
    %v545 = vmax.f32 %v513, 0.0
    %v546 = vmax.f32 %v514, 0.0
    %v547 = vmax.f32 %v515, 0.0
    %v548 = vmax.f32 %v516, 0.0
    %v549 = vmax.f32 %v517, 0.0
    %v550 = vmax.f32 %v518, 0.0
    %v551 = vmax.f32 %v519, 0.0
    %v552 = vmax.f32 %v520, 0.0
    %v553 = vmax.f32 %v521, 0.0
    %v554 = vmax.f32 %v522, 0.0
    %v555 = vmax.f32 %v523, 0.0
    %v556 = vmax.f32 %v524, 0.0
    %v557 = vmax.f32 %v525, 0.0
    %v558 = vmax.f32 %v526, 0.0
    %v559 = vmax.f32 %v527, 0.0
    %v560 = vmax.f32 %v528, 0.0
    %v561 = vmax.f32 %v529, 0.0
    %v562 = vmax.f32 %v530, 0.0
    %v563 = vmax.f32 %v531, 0.0
    %v564 = vmax.f32 %v532, 0.0
    %v565 = vmax.f32 %v533, 0.0
    %v566 = vmax.f32 %v534, 0.0
    %v567 = vmax.f32 %v535, 0.0
    %v568 = vmax.f32 %v536, 0.0
    %v569 = vmax.f32 %v537, 0.0
    %v570 = vmax.f32 %v538, 0.0
    %v571 = vmax.f32 %v539, 0.0
    %v572 = vmax.f32 %v540, 0.0
    %v573 = vmax.f32 %v541, 0.0
    %v574 = vpack.c.bf16 %v544, %v542
    %v575 = vpack.c.bf16 %v545, %v543
    %v576 = vpack.c.bf16 %v548, %v546
    %v577 = vpack.c.bf16 %v549, %v547
    %v578 = vpack.c.bf16 %v552, %v550
    %v579 = vpack.c.bf16 %v553, %v551
    %v580 = vpack.c.bf16 %v556, %v554
    %v581 = vpack.c.bf16 %v557, %v555
    %v582 = vpack.c.bf16 %v560, %v558
    %v583 = vpack.c.bf16 %v561, %v559
    %v584 = vpack.c.bf16 %v564, %v562
    %v585 = vpack.c.bf16 %v565, %v563
    %v586 = vpack.c.bf16 %v568, %v566
    %v587 = vpack.c.bf16 %v569, %v567
    %v588 = vpack.c.bf16 %v572, %v570
    %v589 = vpack.c.bf16 %v573, %v571
    %v590 = vld [vmem:[%s5] sm:$0xf]
    %v591 = vld [vmem:[%s5 + $0x4] sm:$0xf]
    %v592 = vld [vmem:[%s5 + $0x8] sm:$0xf]
    %v593 = vld [vmem:[%s5 + $0xc] sm:$0xf]
    %v594 = vld [vmem:[%s5 + $0x10] sm:$0xf]
    %v595 = vld [vmem:[%s5 + $0x14] sm:$0xf]
    %v596 = vld [vmem:[%s5 + $0x18] sm:$0xf]
    %v597 = vld [vmem:[%s5 + $0x1c] sm:$0xf]
    %v598 = vld [vmem:[%s5 + $0x20] sm:$0xf]
    %v599 = vld [vmem:[%s5 + $0x24] sm:$0xf]
    %v600 = vld [vmem:[%s5 + $0x28] sm:$0xf]
    %v601 = vld [vmem:[%s5 + $0x2c] sm:$0xf]
    %v602 = vld [vmem:[%s5 + $0x30] sm:$0xf]
    %v603 = vld [vmem:[%s5 + $0x34] sm:$0xf]
    %v604 = vld [vmem:[%s5 + $0x38] sm:$0xf]
    %v605 = vld [vmem:[%s5 + $0x3c] sm:$0xf]
    %v606 = vld [vmem:[%s5 + $0x40] sm:$0xf]
    %v607 = vld [vmem:[%s5 + $0x44] sm:$0xf]
    %v608 = vld [vmem:[%s5 + $0x48] sm:$0xf]
    %v609 = vld [vmem:[%s5 + $0x4c] sm:$0xf]
    %v610 = vld [vmem:[%s5 + $0x50] sm:$0xf]
    %v611 = vld [vmem:[%s5 + $0x54] sm:$0xf]
    %v612 = vld [vmem:[%s5 + $0x58] sm:$0xf]
    %v613 = vld [vmem:[%s5 + $0x5c] sm:$0xf]
    %v614 = vld [vmem:[%s5 + $0x60] sm:$0xf]
    %v615 = vld [vmem:[%s5 + $0x64] sm:$0xf]
    %v616 = vld [vmem:[%s5 + $0x68] sm:$0xf]
    %v617 = vld [vmem:[%s5 + $0x6c] sm:$0xf]
    %v618 = vld [vmem:[%s5 + $0x70] sm:$0xf]
    %v619 = vld [vmem:[%s5 + $0x74] sm:$0xf]
    %v620 = vld [vmem:[%s5 + $0x78] sm:$0xf]
    %v621 = vld [vmem:[%s5 + $0x7c] sm:$0xf]
    %v622 = vld [vmem:[%s6] sm:$0x1]
    %v624 = vlaneseq
    %v625 = vshrl.u32 %v624, 7
    %v626 = vsub.s32 0, %v625
    %v627 = vrot.slane %v622, %v626
    %v661 = vunpack.c.l.b16 %v590
    %v662 = vunpack.c.l.b16 %v591
    %v663 = vunpack.c.l.b16 %v592
    %v664 = vunpack.c.l.b16 %v593
    %v665 = vunpack.c.l.b16 %v594
    %v666 = vunpack.c.l.b16 %v595
    %v667 = vunpack.c.l.b16 %v596
    %v668 = vunpack.c.l.b16 %v597
    %v669 = vunpack.c.l.b16 %v598
    %v670 = vunpack.c.l.b16 %v599
    %v671 = vunpack.c.l.b16 %v600
    %v672 = vunpack.c.l.b16 %v601
    %v673 = vunpack.c.l.b16 %v602
    %v674 = vunpack.c.l.b16 %v603
    %v675 = vunpack.c.l.b16 %v604
    %v676 = vunpack.c.l.b16 %v605
    %v677 = vunpack.c.l.b16 %v606
    %v678 = vunpack.c.l.b16 %v607
    %v679 = vunpack.c.l.b16 %v608
    %v680 = vunpack.c.l.b16 %v609
    %v681 = vunpack.c.l.b16 %v610
    %v682 = vunpack.c.l.b16 %v611
    %v683 = vunpack.c.l.b16 %v612
    %v684 = vunpack.c.l.b16 %v613
    %v685 = vunpack.c.l.b16 %v614
    %v686 = vunpack.c.l.b16 %v615
    %v687 = vunpack.c.l.b16 %v616
    %v688 = vunpack.c.l.b16 %v617
    %v689 = vunpack.c.l.b16 %v618
    %v690 = vunpack.c.l.b16 %v619
    %v691 = vunpack.c.l.b16 %v620
    %v692 = vunpack.c.l.b16 %v621
    %v693 = vpack.c.b16 %v662, %v661
    %v694 = vpack.c.b16 %v664, %v663
    %v695 = vpack.c.b16 %v666, %v665
    %v696 = vpack.c.b16 %v668, %v667
    %v697 = vpack.c.b16 %v670, %v669
    %v698 = vpack.c.b16 %v672, %v671
    %v699 = vpack.c.b16 %v674, %v673
    %v700 = vpack.c.b16 %v676, %v675
    %v701 = vpack.c.b16 %v678, %v677
    %v702 = vpack.c.b16 %v680, %v679
    %v703 = vpack.c.b16 %v682, %v681
    %v704 = vpack.c.b16 %v684, %v683
    %v705 = vpack.c.b16 %v686, %v685
    %v706 = vpack.c.b16 %v688, %v687
    %v707 = vpack.c.b16 %v690, %v689
    %v708 = vpack.c.b16 %v692, %v691
    %725 = vmatprep.subr.bf16.mxu0 0
    %726 = vmatpush1.bf16.msra.mxu0 %v693
    %727 = vmatprep.subr.bf16.mxu0 0
    %728 = vmatpush1.bf16.msra.mxu0 %v694
    %729 = vmatprep.subr.bf16.mxu0 0
    %730 = vmatpush1.bf16.msra.mxu0 %v695
    %731 = vmatprep.subr.bf16.mxu0 0
    %732 = vmatpush1.bf16.msra.mxu0 %v696
    %733 = vmatprep.subr.bf16.mxu0 0
    %734 = vmatpush1.bf16.msra.mxu0 %v697
    %735 = vmatprep.subr.bf16.mxu0 0
    %736 = vmatpush1.bf16.msra.mxu0 %v698
    %737 = vmatprep.subr.bf16.mxu0 0
    %738 = vmatpush1.bf16.msra.mxu0 %v699
    %739 = vmatprep.subr.bf16.mxu0 0
    %740 = vmatpush1.bf16.msra.mxu0 %v700
    %741 = vmatprep.subr.bf16.mxu0 0
    %742 = vmatpush1.bf16.msra.mxu0 %v701
    %743 = vmatprep.subr.bf16.mxu0 0
    %744 = vmatpush1.bf16.msra.mxu0 %v702
    %745 = vmatprep.subr.bf16.mxu0 0
    %746 = vmatpush1.bf16.msra.mxu0 %v703
    %747 = vmatprep.subr.bf16.mxu0 0
    %748 = vmatpush1.bf16.msra.mxu0 %v704
    %749 = vmatprep.subr.bf16.mxu0 0
    %750 = vmatpush1.bf16.msra.mxu0 %v705
    %751 = vmatprep.subr.bf16.mxu0 0
    %752 = vmatpush1.bf16.msra.mxu0 %v706
    %753 = vmatprep.subr.bf16.mxu0 0
    %754 = vmatpush1.bf16.msra.mxu0 %v707
    %755 = vmatprep.subr.bf16.mxu0 0
    %756 = vmatpush1.bf16.msra.mxu0 %v708
    %757 = vmatprep.mubr.bf16.mxu0 %v575
    %758 = vmatmul.mubr.bf16.gmra.mrb[0].mxu0 %v574
    %v759 = vpop.f32.mrb[0].mxu0
    %v760 = vadd.f32 %v627, %v759
    %v761 = vpop.f32.mrb[0].mxu0
    %v762 = vpop.f32.mrb[0].mxu0
    %v763 = vadd.f32 %v627, %v762
    %v764 = vpop.f32.mrb[0].mxu0
    %765 = vmatprep.mubr.bf16.mxu0 %v577
    %766 = vmatmul.mubr.bf16.gmra.mrb[0].mxu0 %v576
    %v767 = vpop.f32.mrb[0].mxu0
    %v768 = vadd.f32 %v627, %v767
    %v769 = vpop.f32.mrb[0].mxu0
    %v770 = vpop.f32.mrb[0].mxu0
    %v771 = vadd.f32 %v627, %v770
    %v772 = vpop.f32.mrb[0].mxu0
    %773 = vmatprep.mubr.bf16.mxu0 %v579
    %774 = vmatmul.mubr.bf16.gmra.mrb[0].mxu0 %v578
    %v775 = vpop.f32.mrb[0].mxu0
    %v776 = vadd.f32 %v627, %v775
    %v777 = vpop.f32.mrb[0].mxu0
    %v778 = vpop.f32.mrb[0].mxu0
    %v779 = vadd.f32 %v627, %v778
    %v780 = vpop.f32.mrb[0].mxu0
    %781 = vmatprep.mubr.bf16.mxu0 %v581
    %782 = vmatmul.mubr.bf16.gmra.mrb[0].mxu0 %v580
    %v783 = vpop.f32.mrb[0].mxu0
    %v784 = vadd.f32 %v627, %v783
    %v785 = vpop.f32.mrb[0].mxu0
    %v786 = vpop.f32.mrb[0].mxu0
    %v787 = vadd.f32 %v627, %v786
    %v788 = vpop.f32.mrb[0].mxu0
    %789 = vmatprep.mubr.bf16.mxu0 %v583
    %790 = vmatmul.mubr.bf16.gmra.mrb[0].mxu0 %v582
    %v791 = vpop.f32.mrb[0].mxu0
    %v792 = vadd.f32 %v627, %v791
    %v793 = vpop.f32.mrb[0].mxu0
    %v794 = vpop.f32.mrb[0].mxu0
    %v795 = vadd.f32 %v627, %v794
    %v796 = vpop.f32.mrb[0].mxu0
    %797 = vmatprep.mubr.bf16.mxu0 %v585
    %798 = vmatmul.mubr.bf16.gmra.mrb[0].mxu0 %v584
    %v799 = vpop.f32.mrb[0].mxu0
    %v800 = vadd.f32 %v627, %v799
    %v801 = vpop.f32.mrb[0].mxu0
    %v802 = vpop.f32.mrb[0].mxu0
    %v803 = vadd.f32 %v627, %v802
    %v804 = vpop.f32.mrb[0].mxu0
    %805 = vmatprep.mubr.bf16.mxu0 %v587
    %806 = vmatmul.mubr.bf16.gmra.mrb[0].mxu0 %v586
    %v807 = vpop.f32.mrb[0].mxu0
    %v808 = vadd.f32 %v627, %v807
    %v809 = vpop.f32.mrb[0].mxu0
    %v810 = vpop.f32.mrb[0].mxu0
    %v811 = vadd.f32 %v627, %v810
    %v812 = vpop.f32.mrb[0].mxu0
    %813 = vmatprep.mubr.bf16.mxu0 %v589
    %814 = vmatmul.mubr.bf16.gmra.mrb[0].mxu0 %v588
    %v815 = vpop.f32.mrb[0].mxu0
    %v816 = vadd.f32 %v627, %v815
    %v817 = vpop.f32.mrb[0].mxu0
    %v818 = vpop.f32.mrb[0].mxu0
    %v819 = vadd.f32 %v627, %v818
    %v820 = vpop.f32.mrb[0].mxu0
    %821 = vdwg.mxu0
    %v822 = vmax.f32 %v760, 0.0
    %v823 = vmax.f32 %v763, 0.0
    %v824 = vmax.f32 %v768, 0.0
    %v825 = vmax.f32 %v771, 0.0
    %v826 = vmax.f32 %v776, 0.0
    %v827 = vmax.f32 %v779, 0.0
    %v828 = vmax.f32 %v784, 0.0
    %v829 = vmax.f32 %v787, 0.0
    %v830 = vmax.f32 %v792, 0.0
    %v831 = vmax.f32 %v795, 0.0
    %v832 = vmax.f32 %v800, 0.0
    %v833 = vmax.f32 %v803, 0.0
    %v834 = vmax.f32 %v808, 0.0
    %v835 = vmax.f32 %v811, 0.0
    %v836 = vmax.f32 %v816, 0.0
    %v837 = vmax.f32 %v819, 0.0
    %v838 = vpack.c.bf16 %v823, %v822
    %v839 = vpack.c.bf16 %v825, %v824
    %v840 = vpack.c.bf16 %v827, %v826
    %v841 = vpack.c.bf16 %v829, %v828
    %v842 = vpack.c.bf16 %v831, %v830
    %v843 = vpack.c.bf16 %v833, %v832
    %v844 = vpack.c.bf16 %v835, %v834
    %v845 = vpack.c.bf16 %v837, %v836
    %v846 = vld [vmem:[%s7] sm:$0xf]
    %v847 = vld [vmem:[%s7 + $0x4] sm:$0xf]
    %v848 = vld [vmem:[%s7 + $0x8] sm:$0xf]
    %v849 = vld [vmem:[%s7 + $0xc] sm:$0xf]
    %v850 = vld [vmem:[%s7 + $0x10] sm:$0xf]
    %v851 = vld [vmem:[%s7 + $0x14] sm:$0xf]
    %v852 = vld [vmem:[%s7 + $0x18] sm:$0xf]
    %v853 = vld [vmem:[%s7 + $0x1c] sm:$0xf]
    %v854 = vld [vmem:[%s7 + $0x20] sm:$0xf]
    %v855 = vld [vmem:[%s7 + $0x24] sm:$0xf]
    %v856 = vld [vmem:[%s7 + $0x28] sm:$0xf]
    %v857 = vld [vmem:[%s7 + $0x2c] sm:$0xf]
    %v858 = vld [vmem:[%s7 + $0x30] sm:$0xf]
    %v859 = vld [vmem:[%s7 + $0x34] sm:$0xf]
    %v860 = vld [vmem:[%s7 + $0x38] sm:$0xf]
    %v861 = vld [vmem:[%s7 + $0x3c] sm:$0xf]
    %v862 = vld [vmem:[%s8] sm:$0x1]
    %v864 = vlaneseq
    %v865 = vshrl.u32 %v864, 7
    %v866 = vsub.s32 0, %v865
    %v867 = vrot.slane %v862, %v866
    %v885 = vunpack.c.l.b16 %v846
    %v886 = vunpack.c.l.b16 %v847
    %v887 = vunpack.c.l.b16 %v848
    %v888 = vunpack.c.l.b16 %v849
    %v889 = vunpack.c.l.b16 %v850
    %v890 = vunpack.c.l.b16 %v851
    %v891 = vunpack.c.l.b16 %v852
    %v892 = vunpack.c.l.b16 %v853
    %v893 = vunpack.c.l.b16 %v854
    %v894 = vunpack.c.l.b16 %v855
    %v895 = vunpack.c.l.b16 %v856
    %v896 = vunpack.c.l.b16 %v857
    %v897 = vunpack.c.l.b16 %v858
    %v898 = vunpack.c.l.b16 %v859
    %v899 = vunpack.c.l.b16 %v860
    %v900 = vunpack.c.l.b16 %v861
    %v901 = vpack.c.b16 %v886, %v885
    %v902 = vpack.c.b16 %v888, %v887
    %v903 = vpack.c.b16 %v890, %v889
    %v904 = vpack.c.b16 %v892, %v891
    %v905 = vpack.c.b16 %v894, %v893
    %v906 = vpack.c.b16 %v896, %v895
    %v907 = vpack.c.b16 %v898, %v897
    %v908 = vpack.c.b16 %v900, %v899
    %917 = vmatprep.subr.bf16.mxu0 0
    %918 = vmatpush1.bf16.msra.mxu0 %v901
    %919 = vmatprep.subr.bf16.mxu0 0
    %920 = vmatpush1.bf16.msra.mxu0 %v902
    %921 = vmatprep.subr.bf16.mxu0 0
    %922 = vmatpush1.bf16.msra.mxu0 %v903
    %923 = vmatprep.subr.bf16.mxu0 0
    %924 = vmatpush1.bf16.msra.mxu0 %v904
    %925 = vmatprep.subr.bf16.mxu0 0
    %926 = vmatpush1.bf16.msra.mxu0 %v905
    %927 = vmatprep.subr.bf16.mxu0 0
    %928 = vmatpush1.bf16.msra.mxu0 %v906
    %929 = vmatprep.subr.bf16.mxu0 0
    %930 = vmatpush1.bf16.msra.mxu0 %v907
    %931 = vmatprep.subr.bf16.mxu0 0
    %932 = vmatpush1.bf16.msra.mxu0 %v908
    %933 = vmatprep.subr.bf16.mxu0 0
    %934 = vmatpush1.bf16.msra.mxu0 0
    %935 = vmatprep.subr.bf16.mxu0 0
    %936 = vmatpush1.bf16.msra.mxu0 0
    %937 = vmatprep.subr.bf16.mxu0 0
    %938 = vmatpush1.bf16.msra.mxu0 0
    %939 = vmatprep.subr.bf16.mxu0 0
    %940 = vmatpush1.bf16.msra.mxu0 0
    %941 = vmatprep.subr.bf16.mxu0 0
    %942 = vmatpush1.bf16.msra.mxu0 0
    %943 = vmatprep.subr.bf16.mxu0 0
    %944 = vmatpush1.bf16.msra.mxu0 0
    %945 = vmatprep.subr.bf16.mxu0 0
    %946 = vmatpush1.bf16.msra.mxu0 0
    %947 = vmatprep.subr.bf16.mxu0 0
    %948 = vmatpush1.bf16.msra.mxu0 0
    %949 = vmatprep.mubr.bf16.mxu0 0
    %950 = vmatmul.mubr.bf16.gmra.mrb[0].mxu0 %v838
    %v951 = vpop.f32.mrb[0].mxu0
    %v952 = vadd.f32 %v867, %v951
    %v953 = vpop.f32.mrb[0].mxu0
    %v954 = vpop.f32.mrb[0].mxu0
    %v955 = vadd.f32 %v867, %v954
    %v956 = vpop.f32.mrb[0].mxu0
    %957 = vmatprep.mubr.bf16.mxu0 0
    %958 = vmatmul.mubr.bf16.gmra.mrb[0].mxu0 %v839
    %v959 = vpop.f32.mrb[0].mxu0
    %v960 = vadd.f32 %v867, %v959
    %v961 = vpop.f32.mrb[0].mxu0
    %v962 = vpop.f32.mrb[0].mxu0
    %v963 = vadd.f32 %v867, %v962
    %v964 = vpop.f32.mrb[0].mxu0
    %965 = vmatprep.mubr.bf16.mxu0 0
    %966 = vmatmul.mubr.bf16.gmra.mrb[0].mxu0 %v840
    %v967 = vpop.f32.mrb[0].mxu0
    %v968 = vadd.f32 %v867, %v967
    %v969 = vpop.f32.mrb[0].mxu0
    %v970 = vpop.f32.mrb[0].mxu0
    %v971 = vadd.f32 %v867, %v970
    %v972 = vpop.f32.mrb[0].mxu0
    %973 = vmatprep.mubr.bf16.mxu0 0
    %974 = vmatmul.mubr.bf16.gmra.mrb[0].mxu0 %v841
    %v975 = vpop.f32.mrb[0].mxu0
    %v976 = vadd.f32 %v867, %v975
    %v977 = vpop.f32.mrb[0].mxu0
    %v978 = vpop.f32.mrb[0].mxu0
    %v979 = vadd.f32 %v867, %v978
    %v980 = vpop.f32.mrb[0].mxu0
    %981 = vmatprep.mubr.bf16.mxu0 0
    %982 = vmatmul.mubr.bf16.gmra.mrb[0].mxu0 %v842
    %v983 = vpop.f32.mrb[0].mxu0
    %v984 = vadd.f32 %v867, %v983
    %v985 = vpop.f32.mrb[0].mxu0
    %v986 = vpop.f32.mrb[0].mxu0
    %v987 = vadd.f32 %v867, %v986
    %v988 = vpop.f32.mrb[0].mxu0
    %989 = vmatprep.mubr.bf16.mxu0 0
    %990 = vmatmul.mubr.bf16.gmra.mrb[0].mxu0 %v843
    %v991 = vpop.f32.mrb[0].mxu0
    %v992 = vadd.f32 %v867, %v991
    %v993 = vpop.f32.mrb[0].mxu0
    %v994 = vpop.f32.mrb[0].mxu0
    %v995 = vadd.f32 %v867, %v994
    %v996 = vpop.f32.mrb[0].mxu0
    %997 = vmatprep.mubr.bf16.mxu0 0
    %998 = vmatmul.mubr.bf16.gmra.mrb[0].mxu0 %v844
    %v999 = vpop.f32.mrb[0].mxu0
    %v1000 = vadd.f32 %v867, %v999
    %v1001 = vpop.f32.mrb[0].mxu0
    %v1002 = vpop.f32.mrb[0].mxu0
    %v1003 = vadd.f32 %v867, %v1002
    %v1004 = vpop.f32.mrb[0].mxu0
    %1005 = vmatprep.mubr.bf16.mxu0 0
    %1006 = vmatmul.mubr.bf16.gmra.mrb[0].mxu0 %v845
    %v1007 = vpop.f32.mrb[0].mxu0
    %v1008 = vadd.f32 %v867, %v1007
    %v1009 = vpop.f32.mrb[0].mxu0
    %v1010 = vpop.f32.mrb[0].mxu0
    %v1011 = vadd.f32 %v867, %v1010
    %v1012 = vpop.f32.mrb[0].mxu0
    %1013 = vdwg.mxu0
    %v1014 = vmax.f32 %v952, 0.0
    %v1015 = vmax.f32 %v955, 0.0
    %v1016 = vmax.f32 %v960, 0.0
    %v1017 = vmax.f32 %v963, 0.0
    %v1018 = vmax.f32 %v968, 0.0
    %v1019 = vmax.f32 %v971, 0.0
    %v1020 = vmax.f32 %v976, 0.0
    %v1021 = vmax.f32 %v979, 0.0
    %v1022 = vmax.f32 %v984, 0.0
    %v1023 = vmax.f32 %v987, 0.0
    %v1024 = vmax.f32 %v992, 0.0
    %v1025 = vmax.f32 %v995, 0.0
    %v1026 = vmax.f32 %v1000, 0.0
    %v1027 = vmax.f32 %v1003, 0.0
    %v1028 = vmax.f32 %v1008, 0.0
    %v1029 = vmax.f32 %v1011, 0.0
    %v1030 = vpack.c.bf16 %v1015, %v1014
    %v1031 = vpack.c.bf16 %v1017, %v1016
    %v1032 = vpack.c.bf16 %v1019, %v1018
    %v1033 = vpack.c.bf16 %v1021, %v1020
    %v1034 = vpack.c.bf16 %v1023, %v1022
    %v1035 = vpack.c.bf16 %v1025, %v1024
    %v1036 = vpack.c.bf16 %v1027, %v1026
    %v1037 = vpack.c.bf16 %v1029, %v1028
    %v1038 = vld [vmem:[%s9] sm:$0xf]
    %v1039 = vld [vmem:[%s9 + $0x4] sm:$0xf]
    %v1040 = vld [vmem:[%s9 + $0x8] sm:$0xf]
    %v1041 = vld [vmem:[%s9 + $0xc] sm:$0xf]
    %v1042 = vld [vmem:[%s9 + $0x10] sm:$0xf]
    %v1043 = vld [vmem:[%s9 + $0x14] sm:$0xf]
    %v1044 = vld [vmem:[%s9 + $0x18] sm:$0xf]
    %v1045 = vld [vmem:[%s9 + $0x1c] sm:$0xf]
    %v1046 = vld [vmem:[%s10] sm:$0x1]
    %v1048 = vlaneseq
    %v1049 = vshrl.u32 %v1048, 7
    %v1050 = vsub.s32 0, %v1049
    %v1051 = vrot.slane %v1046, %v1050
    %v1061 = vunpack.c.l.b16 %v1038
    %v1062 = vunpack.c.l.b16 %v1039
    %v1063 = vunpack.c.l.b16 %v1040
    %v1064 = vunpack.c.l.b16 %v1041
    %v1065 = vunpack.c.l.b16 %v1042
    %v1066 = vunpack.c.l.b16 %v1043
    %v1067 = vunpack.c.l.b16 %v1044
    %v1068 = vunpack.c.l.b16 %v1045
    %v1069 = vpack.c.b16 %v1062, %v1061
    %v1070 = vpack.c.b16 %v1064, %v1063
    %v1071 = vpack.c.b16 %v1066, %v1065
    %v1072 = vpack.c.b16 %v1068, %v1067
    %vm1077 = vcmask 523264
    %v1079 = vsel %vm1077, %v1030, 0
    %v1082 = vsel %vm1077, %v1031, 0
    %v1085 = vsel %vm1077, %v1032, 0
    %v1088 = vsel %vm1077, %v1033, 0
    %v1091 = vsel %vm1077, %v1034, 0
    %v1094 = vsel %vm1077, %v1035, 0
    %v1097 = vsel %vm1077, %v1036, 0
    %v1100 = vsel %vm1077, %v1037, 0
    %1102 = vmatprep.subr.bf16.mxu0 0
    %1103 = vmatpush1.bf16.msra.mxu0 %v1069
    %1104 = vmatprep.subr.bf16.mxu0 0
    %1105 = vmatpush1.bf16.msra.mxu0 %v1070
    %1106 = vmatprep.subr.bf16.mxu0 0
    %1107 = vmatpush1.bf16.msra.mxu0 %v1071
    %1108 = vmatprep.subr.bf16.mxu0 0
    %1109 = vmatpush1.bf16.msra.mxu0 %v1072
    %1110 = vmatprep.subr.bf16.mxu0 0
    %1111 = vmatpush1.bf16.msra.mxu0 0
    %1112 = vmatprep.subr.bf16.mxu0 0
    %1113 = vmatpush1.bf16.msra.mxu0 0
    %1114 = vmatprep.subr.bf16.mxu0 0
    %1115 = vmatpush1.bf16.msra.mxu0 0
    %1116 = vmatprep.subr.bf16.mxu0 0
    %1117 = vmatpush1.bf16.msra.mxu0 0
    %1118 = vmatprep.subr.bf16.mxu0 0
    %1119 = vmatpush1.bf16.msra.mxu0 0
    %1120 = vmatprep.subr.bf16.mxu0 0
    %1121 = vmatpush1.bf16.msra.mxu0 0
    %1122 = vmatprep.subr.bf16.mxu0 0
    %1123 = vmatpush1.bf16.msra.mxu0 0
    %1124 = vmatprep.subr.bf16.mxu0 0
    %1125 = vmatpush1.bf16.msra.mxu0 0
    %1126 = vmatprep.subr.bf16.mxu0 0
    %1127 = vmatpush1.bf16.msra.mxu0 0
    %1128 = vmatprep.subr.bf16.mxu0 0
    %1129 = vmatpush1.bf16.msra.mxu0 0
    %1130 = vmatprep.subr.bf16.mxu0 0
    %1131 = vmatpush1.bf16.msra.mxu0 0
    %1132 = vmatprep.subr.bf16.mxu0 0
    %1133 = vmatpush1.bf16.msra.mxu0 0
    %1134 = vmatprep.mubr.bf16.mxu0 0
    %1135 = vmatmul.mubr.bf16.gmra.mrb[0].mxu0 %v1079
    %v1136 = vpop.f32.mrb[0].mxu0
    %v1137 = vadd.f32 %v1051, %v1136
    %v1138 = vpop.f32.mrb[0].mxu0
    %v1139 = vpop.f32.mrb[0].mxu0
    %v1140 = vadd.f32 %v1051, %v1139
    %v1141 = vpop.f32.mrb[0].mxu0
    %1142 = vmatprep.mubr.bf16.mxu0 0
    %1143 = vmatmul.mubr.bf16.gmra.mrb[0].mxu0 %v1082
    %v1144 = vpop.f32.mrb[0].mxu0
    %v1145 = vadd.f32 %v1051, %v1144
    %v1146 = vpop.f32.mrb[0].mxu0
    %v1147 = vpop.f32.mrb[0].mxu0
    %v1148 = vadd.f32 %v1051, %v1147
    %v1149 = vpop.f32.mrb[0].mxu0
    %1150 = vmatprep.mubr.bf16.mxu0 0
    %1151 = vmatmul.mubr.bf16.gmra.mrb[0].mxu0 %v1085
    %v1152 = vpop.f32.mrb[0].mxu0
    %v1153 = vadd.f32 %v1051, %v1152
    %v1154 = vpop.f32.mrb[0].mxu0
    %v1155 = vpop.f32.mrb[0].mxu0
    %v1156 = vadd.f32 %v1051, %v1155
    %v1157 = vpop.f32.mrb[0].mxu0
    %1158 = vmatprep.mubr.bf16.mxu0 0
    %1159 = vmatmul.mubr.bf16.gmra.mrb[0].mxu0 %v1088
    %v1160 = vpop.f32.mrb[0].mxu0
    %v1161 = vadd.f32 %v1051, %v1160
    %v1162 = vpop.f32.mrb[0].mxu0
    %v1163 = vpop.f32.mrb[0].mxu0
    %v1164 = vadd.f32 %v1051, %v1163
    %v1165 = vpop.f32.mrb[0].mxu0
    %1166 = vmatprep.mubr.bf16.mxu0 0
    %1167 = vmatmul.mubr.bf16.gmra.mrb[0].mxu0 %v1091
    %v1168 = vpop.f32.mrb[0].mxu0
    %v1169 = vadd.f32 %v1051, %v1168
    %v1170 = vpop.f32.mrb[0].mxu0
    %v1171 = vpop.f32.mrb[0].mxu0
    %v1172 = vadd.f32 %v1051, %v1171
    %v1173 = vpop.f32.mrb[0].mxu0
    %1174 = vmatprep.mubr.bf16.mxu0 0
    %1175 = vmatmul.mubr.bf16.gmra.mrb[0].mxu0 %v1094
    %v1176 = vpop.f32.mrb[0].mxu0
    %v1177 = vadd.f32 %v1051, %v1176
    %v1178 = vpop.f32.mrb[0].mxu0
    %v1179 = vpop.f32.mrb[0].mxu0
    %v1180 = vadd.f32 %v1051, %v1179
    %v1181 = vpop.f32.mrb[0].mxu0
    %1182 = vmatprep.mubr.bf16.mxu0 0
    %1183 = vmatmul.mubr.bf16.gmra.mrb[0].mxu0 %v1097
    %v1184 = vpop.f32.mrb[0].mxu0
    %v1185 = vadd.f32 %v1051, %v1184
    %v1186 = vpop.f32.mrb[0].mxu0
    %v1187 = vpop.f32.mrb[0].mxu0
    %v1188 = vadd.f32 %v1051, %v1187
    %v1189 = vpop.f32.mrb[0].mxu0
    %1190 = vmatprep.mubr.bf16.mxu0 0
    %1191 = vmatmul.mubr.bf16.gmra.mrb[0].mxu0 %v1100
    %v1192 = vpop.f32.mrb[0].mxu0
    %v1193 = vadd.f32 %v1051, %v1192
    %v1194 = vpop.f32.mrb[0].mxu0
    %v1195 = vpop.f32.mrb[0].mxu0
    %v1196 = vadd.f32 %v1051, %v1195
    %v1197 = vpop.f32.mrb[0].mxu0
    %1198 = vdwg.mxu0
    %1199 = vst [vmem:[#allocation2] sm:$0xff] %v1137
    %1200 = vst [vmem:[#allocation2 + $0x8] sm:$0xff] %v1140
    %1201 = vst [vmem:[#allocation2 + $0x10] sm:$0xff] %v1145
    %1202 = vst [vmem:[#allocation2 + $0x18] sm:$0xff] %v1148
    %1203 = vst [vmem:[#allocation2 + $0x20] sm:$0xff] %v1153
    %1204 = vst [vmem:[#allocation2 + $0x28] sm:$0xff] %v1156
    %1205 = vst [vmem:[#allocation2 + $0x30] sm:$0xff] %v1161
    %1206 = vst [vmem:[#allocation2 + $0x38] sm:$0xff] %v1164
    %1207 = vst [vmem:[#allocation2 + $0x40] sm:$0xff] %v1169
    %1208 = vst [vmem:[#allocation2 + $0x48] sm:$0xff] %v1172
    %1209 = vst [vmem:[#allocation2 + $0x50] sm:$0xff] %v1177
    %1210 = vst [vmem:[#allocation2 + $0x58] sm:$0xff] %v1180
    %1211 = vst [vmem:[#allocation2 + $0x60] sm:$0xff] %v1185
    %1212 = vst [vmem:[#allocation2 + $0x68] sm:$0xff] %v1188
    %1213 = vst [vmem:[#allocation2 + $0x70] sm:$0xff] %v1193
    %1214 = vst [vmem:[#allocation2 + $0x78] sm:$0xff] %v1196
    // Predicated region
    $region46: #{_critic_forward_padded.1} parent=1 // pred_check
      _
    $region47: #{_critic_forward_padded.1} parent=1 // pred_check_branch
      %1216 = sbr.rel (0) target = $region49
    $region48: #{_critic_forward_padded.1} parent=1 // pred_region
      %s1218 = ssub.s32 2048, 2048
      %1219 = vsyncadd [#allocation3], %s1218
      %s1220 = sshll.u32 [#allocation2], 4
      %s1221 = int_to_ptr.vmem [resolvable:$true] %s1220
      %1226 = dma.vmem_to_hbm [thread:$0]  %s1221, 2048, %s11, [#allocation3], 128, 128, 8
    $region49: #{_critic_forward_padded.1} parent=1 // pred_fallthru
      _
    // Predicated region
    $region50: #{_critic_forward_padded.1} parent=1 // pred_check
      _
    $region51: #{_critic_forward_padded.1} parent=1 // pred_check_branch
      %1228 = sbr.rel (0) target = $region53
    $region52: #{_critic_forward_padded.1} parent=1 // pred_region
      %1229 = dma.done [#allocation3], 2048
    $region53: #{_critic_forward_padded.1} parent=1 // pred_fallthru
      _
    %1230 = vsyncpa [#allocation3], 1

</llo_original>
